<compile_context>
chip_gen: v6e
topology: v6e:2x2x1
jax: 0.10.0
libtpu: 0.0.40
codegen_flags: <defaults>
</compile_context>

<pallas_src>
import functools

import jax
import jax.numpy as jnp
from jax.experimental import pallas as pl
from jax.experimental.pallas import tpu as pltpu


_LANE = 128
_SUBLANE = 8
_FALLBACK_VMEM_CAP = 64 * 1024 * 1024   # v7x per-TC physical VMEM (smallest generation)


def _round_up(x, m):
    return (x + m - 1) // m * m


def _vmem_budget():
    """Generation-aware (target, cap) VMEM budget in bytes."""
    try:
        cap = int(pltpu.get_tpu_info().vmem_capacity_bytes)
    except Exception:
        cap = _FALLBACK_VMEM_CAP
    cap = max(cap, 32 * 1024 * 1024)
    return (cap * 3) // 4, cap


def _vmem_simple(tile_b, E, H, x_item, w_item):
    """Working set of the w1-resident kernel (double-buffered pipeline buffers + live f32 temps)."""
    E_l = _round_up(E, _LANE)
    H_l = _round_up(H, _LANE)
    x_buf = 2 * tile_b * E_l * x_item                     # x batch tile, double buffered
    w1_buf = 2 * _round_up(E, _SUBLANE) * H_l * w_item    # resident w1 (2 bufs, constant index map)
    rows = 2 * 2 * _SUBLANE * H_l * 4                     # b1 + w2 rows
    out_buf = 2 * _round_up(tile_b, _LANE) * 4            # lane-dense (1,1,tile_b) output block
    live = 2 * tile_b * H_l * 4                           # f32 hidden + elementwise temp
    return x_buf + w1_buf + rows + out_buf + live


def _vmem_ksplit(tile_b, tk, H, x_item, w_item):
    """Working set of the K-split kernel (x & w1 blocked over E, f32 accumulator in scratch)."""
    H_l = _round_up(H, _LANE)
    x_buf = 2 * tile_b * tk * x_item
    w1_buf = 2 * tk * H_l * w_item
    acc = tile_b * H_l * 4
    rows = 2 * 2 * _SUBLANE * H_l * 4
    out_buf = 2 * _round_up(tile_b, _LANE) * 4
    live = (tile_b * H_l + tile_b * tk + tk * H_l) * 4
    return x_buf + w1_buf + acc + rows + out_buf + live


def _second_layer_store(h, b1_ref, w2_ref, b2_ref, o_ref):
    """bias + ReLU + (H->1) reduce, stored lane-dense as a (1, 1, tile_b) row."""
    h = jnp.maximum(h + b1_ref[...].astype(jnp.float32), 0.0)                 # (tile_b, H) f32
    # Single output feature: VPU multiply + XLU last-axis reduce (no N=1 MXU matmul).
    out_col = jnp.sum(h * w2_ref[...].astype(jnp.float32), axis=-1, keepdims=True)  # (tile_b, 1)
    out_row = jnp.transpose(out_col) + b2_ref[0]                              # (1, tile_b), SMEM scalar bias
    o_ref[...] = out_row.reshape(o_ref.shape).astype(o_ref.dtype)             # (1, 1, tile_b) lane-dense store


def _hn_kernel_resident(x_ref, w1_ref, b1_ref, w2_ref, b2_ref, o_ref):
    """Whole w1 resident in VMEM; one grid axis over batch tiles."""
    h = jnp.dot(x_ref[...], w1_ref[...], preferred_element_type=jnp.float32)
    _second_layer_store(h, b1_ref, w2_ref, b2_ref, o_ref)


def _hn_kernel_ksplit(x_ref, w1_ref, b1_ref, w2_ref, b2_ref, o_ref, acc_ref, *,
                      E, tk, mask_tail):
    """w1 blocked (tk, H) along E; f32 accumulator scratch; finalize on last k step."""
    k = pl.program_id(1)

    xb = x_ref[...]
    w1b = w1_ref[...]
    if mask_tail:
        # Last E block is partial: zero both operands' out-of-bounds region so
        # unspecified (possibly NaN) pad data never reaches the accumulator.
        valid = E - k * tk
        col = jax.lax.broadcasted_iota(jnp.int32, xb.shape, 1)
        xb = jnp.where(col < valid, xb, jnp.zeros_like(xb))
        row = jax.lax.broadcasted_iota(jnp.int32, w1b.shape, 0)
        w1b = jnp.where(row < valid, w1b, jnp.zeros_like(w1b))

    part = jnp.dot(xb, w1b, preferred_element_type=jnp.float32)

    @pl.when(k == 0)
    def _():
        acc_ref[...] = part

    @pl.when(k > 0)
    def _():
        acc_ref[...] += part

    @pl.when(k == pl.num_programs(1) - 1)
    def _():
        _second_layer_store(acc_ref[...], b1_ref, w2_ref, b2_ref, o_ref)


def hn_regression(x, w1, b1, w2, b2, *, tile_b=1024, compute_dtype=None, force_ksplit=False):
    """Fused HNRegression forward.

    x: (B, E); w1: (E, H); b1: (H,); w2: (H, 1); b2: (1,).  Returns (B, 1).
    compute_dtype: optionally stream x/w1 in a narrower dtype (e.g. jnp.bfloat16);
                   accumulation stays f32.
    force_ksplit: testing/tuning hook to force the K-split-over-E path.
    """
    B, E = x.shape
    Ew, H = w1.shape
    assert Ew == E and w2.shape == (H, 1) and b1.shape == (H,) and b2.shape == (1,)

    out_dtype = x.dtype
    if compute_dtype is not None:
        x = x.astype(compute_dtype)
        w1 = w1.astype(compute_dtype)
    x_item = jnp.dtype(x.dtype).itemsize
    w_item = jnp.dtype(w1.dtype).itemsize

    # Degenerate sub-sublane batch: pad to one sublane (trivially small copy).
    B_work = B
    if B < _SUBLANE:
        x = jnp.pad(x, ((0, _SUBLANE - B), (0, 0)))
        B_work = _SUBLANE

    target, cap = _vmem_budget()

    # ---- choose batch tile & mode -----------------------------------------
    tile_b = max(_SUBLANE, min(_round_up(tile_b, _SUBLANE), _round_up(B_work, _SUBLANE)))
    # Don't shrink below 128 rows just to keep w1 resident (K-split handles big w1);
    # tiny batches naturally use a tiny tile.
    floor_b = min(tile_b, max(_SUBLANE, min(_round_up(B_work, _SUBLANE), _LANE)))
    tb = tile_b
    while tb > floor_b and _vmem_simple(tb, E, H, x_item, w_item) > target:
        tb = max(floor_b, _round_up(tb // 2, _SUBLANE))

    over_budget = _vmem_simple(tb, E, H, x_item, w_item) > target
    use_ksplit = (force_ksplit or over_budget) and (E >= 2 * _LANE)

    if not use_ksplit:
        tile_b = tb
        # Prefer >=2 grid steps so megacore parts (v7x: 2 TCs) can shard the batch axis.
        if pl.cdiv(B_work, tile_b) < 2 and tile_b >= 2 * _SUBLANE:
            tile_b = _round_up(tile_b // 2, _SUBLANE)
        nb = pl.cdiv(B_work, tile_b)
        grid = (nb,)
        kernel = _hn_kernel_resident
        in_specs = [
            pl.BlockSpec((tile_b, E), lambda i: (i, 0)),           # x batch tile (pipelined)
            pl.BlockSpec((E, H), lambda i: (0, 0)),                # w1 (resident)
            pl.BlockSpec((1, H), lambda i: (0, 0)),                # b1 row
            pl.BlockSpec((1, H), lambda i: (0, 0)),                # w2 row
            pl.BlockSpec(memory_space=pltpu.MemorySpace.SMEM),     # b2 scalar
        ]
        out_specs = pl.BlockSpec((1, 1, tile_b), lambda i: (i, 0, 0))
        scratch_shapes = []
        dim_sem = ("parallel",)
        vmem_est = _vmem_simple(tile_b, E, H, x_item, w_item)
        w1_reads = 1
    else:
        # K-split over E.
        tk = min(4 * _LANE, (E // _LANE) * _LANE)
        while _vmem_ksplit(tile_b, tk, H, x_item, w_item) > target:
            if tk > _LANE:
                tk //= 2
            elif tile_b > _SUBLANE:
                tile_b = _round_up(tile_b // 2, _SUBLANE)
            else:
                break
        nb = pl.cdiv(B_work, tile_b)
        nk = pl.cdiv(E, tk)
        grid = (nb, nk)
        kernel = functools.partial(_hn_kernel_ksplit, E=E, tk=tk, mask_tail=(E % tk) != 0)
        in_specs = [
            pl.BlockSpec((tile_b, tk), lambda i, k: (i, k)),       # x (batch, E-chunk)
            pl.BlockSpec((tk, H), lambda i, k: (k, 0)),            # w1 E-chunk
            pl.BlockSpec((1, H), lambda i, k: (0, 0)),             # b1 row
            pl.BlockSpec((1, H), lambda i, k: (0, 0)),             # w2 row
            pl.BlockSpec(memory_space=pltpu.MemorySpace.SMEM),     # b2 scalar
        ]
        out_specs = pl.BlockSpec((1, 1, tile_b), lambda i, k: (i, 0, 0))
        scratch_shapes = [pltpu.VMEM((tile_b, H), jnp.float32)]
        dim_sem = ("parallel", "arbitrary")
        vmem_est = _vmem_ksplit(tile_b, tk, H, x_item, w_item)
        w1_reads = nb

    b1_row = b1.reshape(1, H).astype(jnp.float32)
    w2_row = w2.reshape(1, H).astype(jnp.float32)   # (H, 1) column -> (1, H) lane-major row
    b2_smem = b2.astype(jnp.float32)                # (1,) scalar in SMEM

    vmem_limit = int(min(max(int(vmem_est * 1.25), 32 * 1024 * 1024), cap))

    cost = pl.CostEstimate(
        flops=2 * B * E * H + 2 * B * H,
        transcendentals=0,
        bytes_accessed=(B * E * x_item + w1_reads * E * H * w_item
                        + 2 * H * 4 + nb * tile_b * jnp.dtype(out_dtype).itemsize),
    )

    out = pl.pallas_call(
        kernel,
        out_shape=jax.ShapeDtypeStruct((nb, 1, tile_b), out_dtype),
        grid_spec=pltpu.PrefetchScalarGridSpec(
            num_scalar_prefetch=0,
            grid=grid,
            in_specs=in_specs,
            out_specs=out_specs,
            scratch_shapes=scratch_shapes,
        ),
        compiler_params=pltpu.CompilerParams(
            dimension_semantics=dim_sem,
            vmem_limit_bytes=vmem_limit,
        ),
        cost_estimate=cost,
    )(x, w1, b1_row, w2_row, b2_smem)

    # Lane-dense (nb, 1, tile_b) slab -> (B, 1); rows past B (partial last block) are dropped.
    return out.reshape(nb * tile_b)[:B].reshape(B, 1)


def init_params(key, embedding_dim, hidden_dim, dtype=jnp.float32):
    """Deterministic init mirroring torch.nn.Linear (uniform +/- 1/sqrt(fan_in))."""
    k1, k2, k3, k4 = jax.random.split(key, 4)
    bound1 = 1.0 / jnp.sqrt(embedding_dim)
    bound2 = 1.0 / jnp.sqrt(hidden_dim)
    w1 = jax.random.uniform(k1, (embedding_dim, hidden_dim), dtype, -bound1, bound1)
    b1 = jax.random.uniform(k2, (hidden_dim,), dtype, -bound1, bound1)
    w2 = jax.random.uniform(k3, (hidden_dim, 1), dtype, -bound2, bound2)
    b2 = jax.random.uniform(k4, (1,), dtype, -bound2, bound2)
    return w1, b1, w2, b2


if __name__ == "__main__":
    # 1) Small shapes matching the module's forward (x: (batch, embedding_dim)).
    batch, embedding_dim, hidden_dim = 8, 32, 32
    key = jax.random.PRNGKey(0)
    kx, kp = jax.random.split(key)
    x = jax.random.normal(kx, (batch, embedding_dim), jnp.float32)
    w1, b1, w2, b2 = init_params(kp, embedding_dim, hidden_dim)
    out = jax.block_until_ready(hn_regression(x, w1, b1, w2, b2))
    ref = jnp.maximum(x @ w1 + b1, 0.0) @ w2 + b2
    assert out.shape == (batch, 1)
    assert jnp.allclose(out, ref, atol=1e-5, rtol=1e-5)

    # 2) Multi-tile pipelined path with a non-multiple batch (partial last x block, no pad).
    B2, E2, H2 = 1000, 128, 256
    kx2, kp2 = jax.random.split(jax.random.PRNGKey(1))
    x2 = jax.random.normal(kx2, (B2, E2), jnp.float32)
    p2 = init_params(kp2, E2, H2)
    ref2 = jnp.maximum(x2 @ p2[0] + p2[1], 0.0) @ p2[2] + p2[3]
    out2 = jax.block_until_ready(hn_regression(x2, *p2, tile_b=256))
    assert out2.shape == (B2, 1)
    assert jnp.allclose(out2, ref2, atol=1e-4, rtol=1e-4)

    # 3) Optional bf16 streaming path (f32 accumulation).
    out2b = jax.block_until_ready(
        hn_regression(x2, *p2, tile_b=256, compute_dtype=jnp.bfloat16))
    assert out2b.shape == (B2, 1)
    assert jnp.allclose(out2b, ref2, atol=5e-2, rtol=5e-2)

    # 4) K-split-over-E path (exercised at small shapes via force_ksplit),
    #    including E-tail masking and a partial batch block.
    B3, E3, H3 = 100, 640, 128
    kx3, kp3 = jax.random.split(jax.random.PRNGKey(2))
    x3 = jax.random.normal(kx3, (B3, E3), jnp.float32)
    p3 = init_params(kp3, E3, H3)
    ref3 = jnp.maximum(x3 @ p3[0] + p3[1], 0.0) @ p3[2] + p3[3]
    out3 = jax.block_until_ready(hn_regression(x3, *p3, force_ksplit=True))
    assert out3.shape == (B3, 1)
    assert jnp.allclose(out3, ref3, atol=1e-4, rtol=1e-4)

    print("KERNEL_OK")
</pallas_src>

<mosaic_0001>
module attributes {stable_mosaic.version = 11 : i64} {
  func.func @_hn_kernel_resident(%arg0: i32, %arg1: memref<8x32xf32, #tpu.memory_space<vmem>>, %arg2: memref<32x32xf32, #tpu.memory_space<vmem>>, %arg3: memref<1x32xf32, #tpu.memory_space<vmem>>, %arg4: memref<1x32xf32, #tpu.memory_space<vmem>>, %arg5: memref<1xf32, #tpu.memory_space<smem>>, %arg6: memref<1x1x8xf32, #tpu.memory_space<vmem>>) attributes {dimension_semantics = [#tpu.dimension_semantics<parallel>], iteration_bounds = array<i64: 1>, scalar_prefetch = 0 : i64, scratch_operands = 0 : i64, tpu.core_type = #tpu.core_type<tc>, window_params = [{transform_indices = @transform_0, window_bounds = array<i64: 8, 32>}, {pipeline_mode = #tpu.pipeline_mode<synchronous>, transform_indices = @transform_1, window_bounds = array<i64: 32, 32>}, {pipeline_mode = #tpu.pipeline_mode<synchronous>, transform_indices = @transform_2, window_bounds = array<i64: 1, 32>}, {pipeline_mode = #tpu.pipeline_mode<synchronous>, transform_indices = @transform_3, window_bounds = array<i64: 1, 32>}, {transform_indices = @transform_4, window_bounds = array<i64: 1>}, {transform_indices = @transform_5, window_bounds = array<i64: 1, 1, 8>}]} {
    %c0 = arith.constant 0 : index
    %c0_0 = arith.constant 0 : index
    %0 = vector.load %arg1[%c0, %c0_0] : memref<8x32xf32, #tpu.memory_space<vmem>>, vector<8x32xf32>
    %c0_1 = arith.constant 0 : index
    %c0_2 = arith.constant 0 : index
    %1 = vector.load %arg2[%c0_1, %c0_2] : memref<32x32xf32, #tpu.memory_space<vmem>>, vector<32x32xf32>
    %cst = arith.constant dense<0.000000e+00> : vector<8x32xf32>
    %2 = tpu.matmul %0, %1, %cst {dimension_numbers = #tpu.dot_dimension_numbers<[1], [0], [0], [1], [0, 0, 1, 1], [], []>} : vector<8x32xf32>, vector<32x32xf32>, vector<8x32xf32> -> vector<8x32xf32>
    %c0_3 = arith.constant 0 : index
    %c0_4 = arith.constant 0 : index
    %3 = vector.load %arg3[%c0_3, %c0_4] : memref<1x32xf32, #tpu.memory_space<vmem>>, vector<1x32xf32>
    %4 = vector.broadcast %3 : vector<1x32xf32> to vector<8x32xf32>
    %5 = arith.addf %2, %4 : vector<8x32xf32>
    %cst_5 = arith.constant 0.000000e+00 : f32
    %6 = vector.broadcast %cst_5 : f32 to vector<8x32xf32>
    %7 = arith.maximumf %5, %6 : vector<8x32xf32>
    %c0_6 = arith.constant 0 : index
    %c0_7 = arith.constant 0 : index
    %8 = vector.load %arg4[%c0_6, %c0_7] : memref<1x32xf32, #tpu.memory_space<vmem>>, vector<1x32xf32>
    %9 = vector.broadcast %8 : vector<1x32xf32> to vector<8x32xf32>
    %10 = arith.mulf %7, %9 : vector<8x32xf32>
    %cst_8 = arith.constant dense<0.000000e+00> : vector<8xf32>
    %11 = vector.multi_reduction <add>, %10, %cst_8 [1] : vector<8x32xf32> to vector<8xf32>
    %12 = vector.shape_cast %11 : vector<8xf32> to vector<8x1xf32>
    %13 = tpu.transpose %12, [1, 0] : vector<8x1xf32> -> vector<1x8xf32>
    %c0_9 = arith.constant 0 : index
    %14 = memref.load %arg5[%c0_9] : memref<1xf32, #tpu.memory_space<smem>>
    %15 = vector.broadcast %14 : f32 to vector<1x8xf32>
    %16 = arith.addf %13, %15 : vector<1x8xf32>
    %17 = vector.shape_cast %16 : vector<1x8xf32> to vector<1x1x8xf32>
    %c0_10 = arith.constant 0 : index
    %c0_11 = arith.constant 0 : index
    %c0_12 = arith.constant 0 : index
    %18 = vector.load %arg6[%c0_10, %c0_11, %c0_12] : memref<1x1x8xf32, #tpu.memory_space<vmem>>, vector<1x1x8xf32>
    tpu.vector_store %arg6[%c0_10, %c0_11, %c0_12], %17 {strides = array<i32>} : memref<1x1x8xf32, #tpu.memory_space<vmem>>, vector<1x1x8xf32>,
    return
  }
  func.func @transform_0(%arg0: i32) -> (i32, i32) {
    %c0_i32 = arith.constant 0 : i32
    %c0_i32_0 = arith.constant 0 : i32
    return %arg0, %c0_i32 : i32, i32
  }
  func.func @transform_1(%arg0: i32) -> (i32, i32) {
    %c0_i32 = arith.constant 0 : i32
    %c0_i32_0 = arith.constant 0 : i32
    %c0_i32_1 = arith.constant 0 : i32
    return %c0_i32, %c0_i32_0 : i32, i32
  }
  func.func @transform_2(%arg0: i32) -> (i32, i32) {
    %c0_i32 = arith.constant 0 : i32
    %c0_i32_0 = arith.constant 0 : i32
    %c0_i32_1 = arith.constant 0 : i32
    return %c0_i32, %c0_i32_0 : i32, i32
  }
  func.func @transform_3(%arg0: i32) -> (i32, i32) {
    %c0_i32 = arith.constant 0 : i32
    %c0_i32_0 = arith.constant 0 : i32
    %c0_i32_1 = arith.constant 0 : i32
    return %c0_i32, %c0_i32_0 : i32, i32
  }
  func.func @transform_4(%arg0: i32) -> i32 {
    %c0_i32 = arith.constant 0 : i32
    %c0_i32_0 = arith.constant 0 : i32
    return %c0_i32 : i32
  }
  func.func @transform_5(%arg0: i32) -> (i32, i32, i32) {
    %c0_i32 = arith.constant 0 : i32
    %c0_i32_0 = arith.constant 0 : i32
    %c0_i32_1 = arith.constant 0 : i32
    return %arg0, %c0_i32, %c0_i32_0 : i32, i32, i32
  }
}

</mosaic_0001>

<llo_original>
// kernel: tpu_custom_call.1
$region0: #{tpu_custom_call.1}
  #allocation0 [shape = 'u32[]', space=smem, size = 0x4, offset = 0x4, fixed_abs, tag = 'smem constant byte address 0x4 - core index']
  #allocation1 [shape = 'u32[144,128]{1,0:T(1,128)}', space=vmem, size = 0x12000, scoped, tag = 'internal scratch']
  #allocation2 [shape = 'f32[1]{0:T(128)S(6)}', space=smem, size = 0x200, scoped, tag = 'scoped memory for tpu_custom_call.1']
  %s0 = inlined_call_operand.hbm [shape: f32[8,32], index: 0, kind: input, shape index: {}]
  %s1 = inlined_call_operand.hbm [shape: f32[32,32], index: 1, kind: input, shape index: {}]
  %s2 = inlined_call_operand.vmem [shape: f32[1,32], index: 2, kind: input, shape index: {}]
  %s3 = inlined_call_operand.vmem [shape: f32[1,32], index: 3, kind: input, shape index: {}]
  %s4 = inlined_call_operand.<no memory space> [shape: f32[1], index: 4, kind: input, shape index: {}]
  %s5 = inlined_call_operand.hbm [shape: f32[1,1,8], index: 5, kind: output, shape index: {}]
  %s6 = sld [smem:[#allocation0]]
  $region38: #{tpu_custom_call.1} parent=0
    _
  %s8 = ssub.s32 1, %s6
  %s9 = scalar_select 0, %s8, %s6
  %10 = sst [smem:[#allocation2]] %s4
  $region1: #{tpu_custom_call.1} parent=0
    #allocation3 [shape = 'u8[4096]{0}', space=vmem, size = 0x1000, scoped, tag = 'input window, operand 0, single buffered']
    #allocation4 [shape = 's32[1]{0}', space=sflag, size = 0x4, scoped, tag = 'scoped memory for tpu_custom_call.1']
    #allocation5 [shape = 's32[1]{0}', space=sflag, size = 0x4, scoped, tag = 'scoped memory for tpu_custom_call.1']
    #allocation6 [shape = 'u8[16384]{0}', space=vmem, size = 0x4000, scoped, tag = 'input window, operand 1, single buffered']
    #allocation7 [shape = 's32[1]{0}', space=sflag, size = 0x4, scoped, tag = 'scoped memory for tpu_custom_call.1']
    #allocation8 [shape = 'u8[512]{0}', space=vmem, size = 0x400, scoped, tag = 'output window, operand 0, single buffered']
    %11 = vsyncpa [#allocation4], 0
    %12 = vsyncpa [#allocation7], 0
    %13 = vsyncpa [#allocation5], 0
    // Predicated region
    $region2: #{tpu_custom_call.1} parent=1 // pred_check
      _
    $region3: #{tpu_custom_call.1} parent=1 // pred_check_branch
      %15 = sbr.rel (0) target = $region5
    $region4: #{tpu_custom_call.1} parent=1 // pred_region
      %s17 = ssub.s32 128, 128
      %18 = vsyncadd [#allocation4], %s17
      %s20 = sshll.u32 [#allocation3], 4
      %s21 = int_to_ptr.vmem [resolvable:$true] %s20
      %23 = dma.hbm_to_vmem [thread:$0]  %s0, 128, %s21, [#allocation4]
    $region5: #{tpu_custom_call.1} parent=1 // pred_fallthru
      _
    // Predicated region
    $region6: #{tpu_custom_call.1} parent=1 // pred_check
      _
    $region7: #{tpu_custom_call.1} parent=1 // pred_check_branch
      %25 = sbr.rel (0) target = $region9
    $region8: #{tpu_custom_call.1} parent=1 // pred_region
      %s27 = ssub.s32 512, 512
      %28 = vsyncadd [#allocation7], %s27
      %s29 = sshll.u32 [#allocation6], 4
      %s30 = int_to_ptr.vmem [resolvable:$true] %s29
      %35 = dma.hbm_to_vmem [thread:$0]  %s1, 512, %s30, [#allocation7], 128, 128, 8
    $region9: #{tpu_custom_call.1} parent=1 // pred_fallthru
      _
    // Predicated region
    $region10: #{tpu_custom_call.1} parent=1 // pred_check
      _
    $region11: #{tpu_custom_call.1} parent=1 // pred_check_branch
      %37 = sbr.rel (0) target = $region13
    $region12: #{tpu_custom_call.1} parent=1 // pred_region
      _
    $region13: #{tpu_custom_call.1} parent=1 // pred_fallthru
      _
    // Predicated region
    $region14: #{tpu_custom_call.1} parent=1 // pred_check
      _
    $region15: #{tpu_custom_call.1} parent=1 // pred_check_branch
      %39 = sbr.rel (0) target = $region17
    $region16: #{tpu_custom_call.1} parent=1 // pred_region
      _
    $region17: #{tpu_custom_call.1} parent=1 // pred_fallthru
      _
    // Predicated region
    $region18: #{tpu_custom_call.1} parent=1 // pred_check
      _
    $region19: #{tpu_custom_call.1} parent=1 // pred_check_branch
      %41 = sbr.rel (0) target = $region21
    $region20: #{tpu_custom_call.1} parent=1 // pred_region
      _
    $region21: #{tpu_custom_call.1} parent=1 // pred_fallthru
      _
    // Predicated region
    $region22: #{tpu_custom_call.1} parent=1 // pred_check
      _
    $region23: #{tpu_custom_call.1} parent=1 // pred_check_branch
      %43 = sbr.rel (0) target = $region25
    $region24: #{tpu_custom_call.1} parent=1 // pred_region
      %44 = dma.done [#allocation4], 128
    $region25: #{tpu_custom_call.1} parent=1 // pred_fallthru
      _
    // Predicated region
    $region26: #{tpu_custom_call.1} parent=1 // pred_check
      _
    $region27: #{tpu_custom_call.1} parent=1 // pred_check_branch
      %46 = sbr.rel (0) target = $region29
    $region28: #{tpu_custom_call.1} parent=1 // pred_region
      %47 = dma.done [#allocation7], 512
    $region29: #{tpu_custom_call.1} parent=1 // pred_fallthru
      _
    %v48 = vld [vmem:[#allocation3] sm:$0xff]
    %v49 = vld [vmem:[#allocation6] sm:$0xff]
    %v50 = vld [vmem:[#allocation6 + $0x8] sm:$0xff]
    %v51 = vld [vmem:[#allocation6 + $0x10] sm:$0xff]
    %v52 = vld [vmem:[#allocation6 + $0x18] sm:$0xff]
    %v53 = vld [vmem:[%s2] sm:$0x1]
    %v55 = vlaneseq
    %v56 = vshrl.u32 %v55, 7
    %v57 = vsub.s32 0, %v56
    %v58 = vrot.slane %v53, %v57
    %vm60 = vcmask 261120
    %v62 = vsel %vm60, %v48, 0
    %64 = vmatprep.subr.mxu0 0.0
    %65 = vmatpush1.msra.mxu0 0.0
    %66 = vmatprep.subr.mxu0 0.0
    %67 = vmatpush1.msra.mxu0 0.0
    %68 = vmatprep.subr.mxu0 0.0
    %69 = vmatpush1.msra.mxu0 0.0
    %70 = vmatprep.subr.mxu0 0.0
    %71 = vmatpush1.msra.mxu0 0.0
    %72 = vmatprep.subr.mxu0 0.0
    %73 = vmatpush1.msra.mxu0 0.0
    %74 = vmatprep.subr.mxu0 0.0
    %75 = vmatpush1.msra.mxu0 0.0
    %76 = vmatprep.subr.mxu0 0.0
    %77 = vmatpush1.msra.mxu0 0.0
    %78 = vmatprep.subr.mxu0 0.0
    %79 = vmatpush1.msra.mxu0 0.0
    %80 = vmatprep.subr.mxu0 0.0
    %81 = vmatpush1.msra.mxu0 0.0
    %82 = vmatprep.subr.mxu0 0.0
    %83 = vmatpush1.msra.mxu0 0.0
    %84 = vmatprep.subr.mxu0 0.0
    %85 = vmatpush1.msra.mxu0 0.0
    %86 = vmatprep.subr.mxu0 0.0
    %87 = vmatpush1.msra.mxu0 0.0
    %88 = vmatprep.subr.mxu0 0.0
    %89 = vmatpush1.msra.mxu0 %v52
    %90 = vmatprep.subr.mxu0 0.0
    %91 = vmatpush1.msra.mxu0 %v51
    %92 = vmatprep.subr.mxu0 0.0
    %93 = vmatpush1.msra.mxu0 %v50
    %94 = vmatprep.subr.mxu0 0.0
    %95 = vmatpush1.msra.mxu0 %v49
    %96 = vmatprep.subr.mxu0 0.0
    %97 = vmatpush2.msra.mxu0 0.0
    %98 = vmatprep.subr.mxu0 0.0
    %99 = vmatpush2.msra.mxu0 0.0
    %100 = vmatprep.subr.mxu0 0.0
    %101 = vmatpush2.msra.mxu0 0.0
    %102 = vmatprep.subr.mxu0 0.0
    %103 = vmatpush2.msra.mxu0 0.0
    %104 = vmatprep.subr.mxu0 0.0
    %105 = vmatpush2.msra.mxu0 0.0
    %106 = vmatprep.subr.mxu0 0.0
    %107 = vmatpush2.msra.mxu0 0.0
    %108 = vmatprep.subr.mxu0 0.0
    %109 = vmatpush2.msra.mxu0 0.0
    %110 = vmatprep.subr.mxu0 0.0
    %111 = vmatpush2.msra.mxu0 0.0
    %112 = vmatprep.subr.mxu0 0.0
    %113 = vmatpush2.msra.mxu0 0.0
    %114 = vmatprep.subr.mxu0 0.0
    %115 = vmatpush2.msra.mxu0 0.0
    %116 = vmatprep.subr.mxu0 0.0
    %117 = vmatpush2.msra.mxu0 0.0
    %118 = vmatprep.subr.mxu0 0.0
    %119 = vmatpush2.msra.mxu0 0.0
    %120 = vmatprep.subr.mxu0 0.0
    %121 = vmatpush2.msra.mxu0 0.0
    %122 = vmatprep.subr.mxu0 0.0
    %123 = vmatpush2.msra.mxu0 0.0
    %124 = vmatprep.subr.mxu0 0.0
    %125 = vmatpush2.msra.mxu0 0.0
    %126 = vmatprep.subr.mxu0 0.0
    %127 = vmatpush2.msra.mxu0 0.0
    %128 = vmatprep.mubr.f32.mxu0 0.0
    %129 = vmatmul.mubr.f32.gmra.mxu0 %v62
    %v130 = vpop.f32.mrf.mxu0
    %v131 = vadd.f32 %v58, %v130
    %v132 = vpop.f32.mrf.mxu0
    %133 = vdwg.mxu0
    %v134 = vmax.f32 %v131, 0.0
    %v135 = vld [vmem:[%s3] sm:$0x1]
    %v137 = vlaneseq
    %v138 = vshrl.u32 %v137, 7
    %v139 = vsub.s32 0, %v138
    %v140 = vrot.slane %v135, %v139
    %v142 = vmul.f32 %v134, %v140
    %v143 = vsel %vm60, %v142, 0.0
    %144 = vadd.xlane.f32.xlu0 %v143
    %v145 = vpop.xlane.xlu0 %144
    %146 = vxpose.xlu0.b32.start [1/16] %v145, 128
    %147 = vxpose.xlu0.b32.cont [2/16] 0.0, 128
    %148 = vxpose.xlu0.b32.cont [3/16] 0.0, 128
    %149 = vxpose.xlu0.b32.cont [4/16] 0.0, 128
    %150 = vxpose.xlu0.b32.cont [5/16] 0.0, 128
    %151 = vxpose.xlu0.b32.cont [6/16] 0.0, 128
    %152 = vxpose.xlu0.b32.cont [7/16] 0.0, 128
    %153 = vxpose.xlu0.b32.cont [8/16] 0.0, 128
    %154 = vxpose.xlu0.b32.cont [9/16] 0.0, 128
    %155 = vxpose.xlu0.b32.cont [10/16] 0.0, 128
    %156 = vxpose.xlu0.b32.cont [11/16] 0.0, 128
    %157 = vxpose.xlu0.b32.cont [12/16] 0.0, 128
    %158 = vxpose.xlu0.b32.cont [13/16] 0.0, 128
    %159 = vxpose.xlu0.b32.cont [14/16] 0.0, 128
    %160 = vxpose.xlu0.b32.cont [15/16] 0.0, 128
    %161 = vxpose.xlu0.b32.end [16/16] 0.0, 128
    %v162 = vpop.trf.xlu0
    %v163 = vpop.trf.xlu0
    %v164 = vpop.trf.xlu0
    %v165 = vpop.trf.xlu0
    %v166 = vpop.trf.xlu0
    %v167 = vpop.trf.xlu0
    %v168 = vpop.trf.xlu0
    %v169 = vpop.trf.xlu0
    %v170 = vpop.trf.xlu0
    %v171 = vpop.trf.xlu0
    %v172 = vpop.trf.xlu0
    %v173 = vpop.trf.xlu0
    %v174 = vpop.trf.xlu0
    %v175 = vpop.trf.xlu0
    %v176 = vpop.trf.xlu0
    %v177 = vpop.trf.xlu0
    %s178 = sld [smem:[#allocation2]]
    %v179 = vstv %s178
    %v180 = vadd.f32 %v162, %v179
    %vm181 = vcmask 57344
    %182 = vst.msk [vmem:[#allocation8] sm:$0x1] %vm181, %v180
    // Predicated region
    $region30: #{tpu_custom_call.1} parent=1 // pred_check
      _
    $region31: #{tpu_custom_call.1} parent=1 // pred_check_branch
      %184 = sbr.rel (0) target = $region33
    $region32: #{tpu_custom_call.1} parent=1 // pred_region
      %s186 = ssub.s32 16, 16
      %187 = vsyncadd [#allocation5], %s186
      %s189 = sshll.u32 [#allocation8], 4
      %s190 = int_to_ptr.vmem [resolvable:$true] %s189
      %192 = dma.vmem_to_hbm [thread:$0]  %s190, 16, %s5, [#allocation5]
    $region33: #{tpu_custom_call.1} parent=1 // pred_fallthru
      _
    // Predicated region
    $region34: #{tpu_custom_call.1} parent=1 // pred_check
      _
    $region35: #{tpu_custom_call.1} parent=1 // pred_check_branch
      %194 = sbr.rel (0) target = $region37
    $region36: #{tpu_custom_call.1} parent=1 // pred_region
      %195 = dma.done [#allocation5], 16
    $region37: #{tpu_custom_call.1} parent=1 // pred_fallthru
      _
    %196 = vsyncpa [#allocation4], 1
    %197 = vsyncpa [#allocation7], 1
    %198 = vsyncpa [#allocation5], 1

</llo_original>
